<compile_context>
chip_gen: v6e
topology: v6e:2x2x1
jax: 0.10.0
libtpu: 0.0.40
codegen_flags: <defaults>
</compile_context>

<pallas_src>
import functools

import jax
import jax.numpy as jnp
from jax.experimental import pallas as pl
from jax.experimental.pallas import tpu as pltpu

BN_EPS = 1e-5
BN_SCALE = 1.0 / (1.0 + BN_EPS) ** 0.5  # fresh BN: gamma=1, beta=0, mean=0, var=1
IN_EPS = 1e-5
NUM_CLASSES = 576
EMBED_DIM = 2048


# ----------------------------- tiling helpers -----------------------------

def _round_up(x, m):
    return (x + m - 1) // m * m


def _pick_tm(m):
    """Pick an M tile that divides M whenever possible (avoids padding)."""
    for t in (256, 128, 64, 32, 16):
        if m % t == 0:
            return t, m
    if m < 16:
        return m, m                     # single block == full dim
    mp = _round_up(m, 16)
    for t in (256, 128, 64, 32, 16):
        if mp % t == 0:
            return t, mp
    return 16, mp


def _pick_tk(k):
    if k % 128 == 0:
        for t in (512, 384, 256, 128):
            if k % t == 0:
                return t
    return k                            # single K block == full dim (147, 64, 576)


def _pick_tn(n):
    for t in (256, 128):
        if n % t == 0:
            return t
    return n                            # e.g. 576 (classifier), 64 (stem)


# ----------------------------- Pallas kernels -----------------------------

def _matmul_kernel(relu, has_res, *refs):
    """Tiled bf16 matmul, f32 accumulation, fused scale/bias (+res) (+ReLU)."""
    if has_res:
        a_ref, b_ref, s_ref, t_ref, res_ref, o_ref, acc_ref = refs
    else:
        a_ref, b_ref, s_ref, t_ref, o_ref, acc_ref = refs
        res_ref = None

    @pl.when(pl.program_id(2) == 0)
    def _():
        acc_ref[...] = jnp.zeros_like(acc_ref)

    acc_ref[...] += jnp.dot(a_ref[...], b_ref[...],
                            preferred_element_type=jnp.float32)

    @pl.when(pl.program_id(2) == pl.num_programs(2) - 1)
    def _():
        y = acc_ref[...] * s_ref[...] + t_ref[...]
        if has_res:
            y = y + res_ref[...].astype(jnp.float32)
        if relu:
            y = jnp.maximum(y, 0.0)
        o_ref[...] = y.astype(o_ref.dtype)


def _ibn_relu_kernel(half, x_ref, o_ref):
    """IBN-a: instance-norm on first `half` channels, folded BN on the rest, ReLU."""
    x = x_ref[...].astype(jnp.float32)               # (1, HW, C)
    mean = jnp.mean(x, axis=1, keepdims=True)
    var = jnp.mean(jnp.square(x - mean), axis=1, keepdims=True)
    x_in = (x - mean) * jax.lax.rsqrt(var + IN_EPS)  # gamma=1, beta=0
    x_bn = x * BN_SCALE                              # folded fresh BN
    ch = jax.lax.broadcasted_iota(jnp.int32, (1, 1, x.shape[-1]), 2)
    y = jnp.where(ch < half, x_in, x_bn)
    o_ref[...] = jnp.maximum(y, 0.0).astype(o_ref.dtype)


def _maxpool_kernel(ho, wo, ee_ref, eo_ref, oe_ref, oo_ref, o_ref):
    """3x3 stride-2 max-pool from 4 even/odd parity planes of the padded input."""
    m = ee_ref[0, :ho, :wo, :]
    m = jnp.maximum(m, ee_ref[0, :ho, 1:wo + 1, :])
    m = jnp.maximum(m, ee_ref[0, 1:ho + 1, :wo, :])
    m = jnp.maximum(m, ee_ref[0, 1:ho + 1, 1:wo + 1, :])
    m = jnp.maximum(m, eo_ref[0, :ho, :wo, :])
    m = jnp.maximum(m, eo_ref[0, 1:ho + 1, :wo, :])
    m = jnp.maximum(m, oe_ref[0, :ho, :wo, :])
    m = jnp.maximum(m, oe_ref[0, :ho, 1:wo + 1, :])
    m = jnp.maximum(m, oo_ref[0, :ho, :wo, :])
    o_ref[0] = m


def _mean_kernel(x_ref, o_ref):
    x = x_ref[...].astype(jnp.float32)
    o_ref[...] = jnp.mean(x, axis=1, keepdims=True).astype(o_ref.dtype)


def _bn1d_kernel(x_ref, o_ref):
    o_ref[...] = x_ref[...] * BN_SCALE               # gamma=1, mean=0, var=1, beta=0


# ----------------------------- matmul wrapper -----------------------------

def _matmul_scale_bias(a, b, scale, bias, relu=False, residual=None,
                       out_dtype=jnp.bfloat16):
    """(M,K)x(K,N) bf16 matmul with fused f32 scale/bias (+residual) (+ReLU)."""
    M, K = a.shape
    _, N = b.shape
    tm, Mp = _pick_tm(M)
    tk = _pick_tk(K)
    tn = _pick_tn(N)

    a_p = a if Mp == M else jnp.pad(a, ((0, Mp - M), (0, 0)))
    s_p = scale.reshape(1, N).astype(jnp.float32)
    t_p = bias.reshape(1, N).astype(jnp.float32)

    has_res = residual is not None
    inputs = [a_p, b, s_p, t_p]
    in_specs = [
        pl.BlockSpec((tm, tk), lambda i, j, k: (i, k)),
        pl.BlockSpec((tk, tn), lambda i, j, k: (k, j)),
        pl.BlockSpec((1, tn), lambda i, j, k: (0, j)),
        pl.BlockSpec((1, tn), lambda i, j, k: (0, j)),
    ]
    if has_res:
        res = residual if Mp == M else jnp.pad(residual, ((0, Mp - M), (0, 0)))
        inputs.append(res)                       # bf16 residual: half the HBM reads
        in_specs.append(pl.BlockSpec((tm, tn), lambda i, j, k: (i, j)))

    out = pl.pallas_call(
        functools.partial(_matmul_kernel, relu, has_res),
        out_shape=jax.ShapeDtypeStruct((Mp, N), out_dtype),
        grid_spec=pltpu.PrefetchScalarGridSpec(
            num_scalar_prefetch=0,
            grid=(Mp // tm, N // tn, K // tk),
            in_specs=in_specs,
            out_specs=pl.BlockSpec((tm, tn), lambda i, j, k: (i, j)),
            scratch_shapes=[pltpu.VMEM((tm, tn), jnp.float32)],
        ),
        compiler_params=pltpu.CompilerParams(
            dimension_semantics=("parallel", "parallel", "arbitrary")),
    )(*inputs)
    return out if Mp == M else out[:M]


# ----------------------------- JAX wrappers -----------------------------

def _im2col(x, kh, kw, stride, pad):
    n, h, w, c = x.shape
    xp = jnp.pad(x, ((0, 0), (pad, pad), (pad, pad), (0, 0)))
    ho = (h + 2 * pad - kh) // stride + 1
    wo = (w + 2 * pad - kw) // stride + 1
    cols = []
    for i in range(kh):
        for j in range(kw):
            cols.append(xp[:, i:i + stride * (ho - 1) + 1:stride,
                           j:j + stride * (wo - 1) + 1:stride, :])
    return jnp.concatenate(cols, axis=-1), ho, wo


@functools.partial(jax.jit, static_argnames=("stride", "pad", "relu"))
def conv_bn(x, w, scale, bias, residual=None, *, stride=1, pad=0, relu=False):
    """NHWC conv (im2col + bf16 Pallas matmul) with fused BN (+residual) (+ReLU).

    Activations are kept in bf16 end-to-end; accumulation and the BN/residual
    epilogue run in f32, the output is written back as bf16.
    """
    cout, cin, kh, kw = w.shape
    n = x.shape[0]
    xb = x.astype(jnp.bfloat16)
    if kh == 1 and kw == 1:
        xs = xb[:, ::stride, ::stride, :] if stride > 1 else xb
        _, ho, wo, _ = xs.shape
        cols = xs.reshape(n * ho * wo, cin)
        wmat = w.reshape(cout, cin).T
    else:
        cols3, ho, wo = _im2col(xb, kh, kw, stride, pad)
        cols = cols3.reshape(n * ho * wo, kh * kw * cin)
        wmat = jnp.transpose(w, (2, 3, 1, 0)).reshape(kh * kw * cin, cout)
    res2 = None if residual is None else \
        residual.astype(jnp.bfloat16).reshape(n * ho * wo, cout)
    y = _matmul_scale_bias(cols, wmat.astype(jnp.bfloat16), scale, bias,
                           relu=relu, residual=res2, out_dtype=jnp.bfloat16)
    return y.reshape(n, ho, wo, cout)


@functools.partial(jax.jit, static_argnames=("half",))
def ibn_relu(x, *, half):
    n, h, w, c = x.shape
    hw = h * w
    x2 = x.reshape(n, hw, c)
    out = pl.pallas_call(
        functools.partial(_ibn_relu_kernel, half),
        out_shape=jax.ShapeDtypeStruct((n, hw, c), x2.dtype),
        grid_spec=pltpu.PrefetchScalarGridSpec(
            num_scalar_prefetch=0,
            grid=(n,),
            in_specs=[pl.BlockSpec((1, hw, c), lambda b: (b, 0, 0))],
            out_specs=pl.BlockSpec((1, hw, c), lambda b: (b, 0, 0)),
        ),
        compiler_params=pltpu.CompilerParams(dimension_semantics=("parallel",)),
    )(x2)
    return out.reshape(n, h, w, c)


@jax.jit
def maxpool_3x3_s2(x):
    n, h, w, c = x.shape
    ho = (h - 1) // 2 + 1
    wo = (w - 1) // 2 + 1
    hp, wp = 2 * ho + 2, 2 * wo + 2
    xp = jnp.pad(x, ((0, 0), (1, hp - h - 1), (1, wp - w - 1), (0, 0)),
                 constant_values=-jnp.inf)
    xr = xp.reshape(n, ho + 1, 2, wo + 1, 2, c)
    ee = xr[:, :, 0, :, 0, :]
    eo = xr[:, :, 0, :, 1, :]
    oe = xr[:, :, 1, :, 0, :]
    oo = xr[:, :, 1, :, 1, :]
    plane_spec = pl.BlockSpec((1, ho + 1, wo + 1, c), lambda b: (b, 0, 0, 0))
    return pl.pallas_call(
        functools.partial(_maxpool_kernel, ho, wo),
        out_shape=jax.ShapeDtypeStruct((n, ho, wo, c), x.dtype),
        grid_spec=pltpu.PrefetchScalarGridSpec(
            num_scalar_prefetch=0,
            grid=(n,),
            in_specs=[plane_spec, plane_spec, plane_spec, plane_spec],
            out_specs=pl.BlockSpec((1, ho, wo, c), lambda b: (b, 0, 0, 0)),
        ),
        compiler_params=pltpu.CompilerParams(dimension_semantics=("parallel",)),
    )(ee, eo, oe, oo)


@jax.jit
def global_avgpool(x):
    n, h, w, c = x.shape
    hw = h * w
    x2 = x.reshape(n, hw, c)
    out = pl.pallas_call(
        _mean_kernel,
        out_shape=jax.ShapeDtypeStruct((n, 1, c), jnp.float32),
        grid_spec=pltpu.PrefetchScalarGridSpec(
            num_scalar_prefetch=0,
            grid=(n,),
            in_specs=[pl.BlockSpec((1, hw, c), lambda b: (b, 0, 0))],
            out_specs=pl.BlockSpec((1, 1, c), lambda b: (b, 0, 0)),
        ),
        compiler_params=pltpu.CompilerParams(dimension_semantics=("parallel",)),
    )(x2)
    return out.reshape(n, c)


@jax.jit
def bottleneck_bn1d(x):
    return pl.pallas_call(
        _bn1d_kernel,
        out_shape=jax.ShapeDtypeStruct(x.shape, x.dtype),
    )(x)


@jax.jit
def classifier(f_i, w_cls):
    ncls = w_cls.shape[0]
    return _matmul_scale_bias(
        f_i.astype(jnp.bfloat16), w_cls.T.astype(jnp.bfloat16),
        jnp.ones((ncls,), jnp.float32), jnp.zeros((ncls,), jnp.float32),
        relu=False, out_dtype=jnp.float32)


# ----------------------------- model definition -----------------------------

def _bn_fold(c):
    return jnp.full((c,), BN_SCALE, jnp.float32), jnp.zeros((c,), jnp.float32)


def init_params(key):
    counter = [0]

    def conv_init(cout, cin, kh, kw):
        counter[0] += 1
        k = jax.random.fold_in(key, counter[0])
        fan_in = cin * kh * kw
        std = (1.0 / fan_in) ** 0.5
        return jax.random.normal(k, (cout, cin, kh, kw), jnp.float32) * std

    params = {"conv1": conv_init(64, 3, 7, 7)}
    # resnet101_ibn_a: layers = [3, 4, 23, 3], ibn_cfg = ('a', 'a', 'a', None)
    layer_cfg = [(64, 3, 1, "a"), (128, 4, 2, "a"), (256, 23, 2, "a"), (512, 3, 2, None)]
    inplanes = 64
    blocks = []
    for planes, nblocks, stride, ibn in layer_cfg:
        for bi in range(nblocks):
            s = stride if bi == 0 else 1
            blk = {
                "conv1": conv_init(planes, inplanes, 1, 1),
                "conv2": conv_init(planes, planes, 3, 3),
                "conv3": conv_init(planes * 4, planes, 1, 1),
                "stride": s,
                "ibn": ibn,
                "planes": planes,
            }
            if bi == 0 and (s != 1 or inplanes != planes * 4):
                blk["ds"] = conv_init(planes * 4, inplanes, 1, 1)
            blocks.append(blk)
            inplanes = planes * 4
    params["blocks"] = blocks
    counter[0] += 1
    params["cls_w"] = jax.random.normal(
        jax.random.fold_in(key, counter[0]), (NUM_CLASSES, EMBED_DIM),
        jnp.float32) * 0.001
    return params


def bottleneck_forward(x, blk):
    planes = blk["planes"]
    s = blk["stride"]

    if "ds" in blk:
        sd, bd = _bn_fold(planes * 4)
        residual = conv_bn(x, blk["ds"], sd, bd, stride=s, pad=0, relu=False)
    else:
        residual = x

    if blk["ibn"] == "a":
        s1 = jnp.ones((planes,), jnp.float32)
        b1 = jnp.zeros((planes,), jnp.float32)
        out = conv_bn(x, blk["conv1"], s1, b1, stride=1, pad=0, relu=False)
        out = ibn_relu(out, half=planes // 2)
    else:
        s1, b1 = _bn_fold(planes)
        out = conv_bn(x, blk["conv1"], s1, b1, stride=1, pad=0, relu=True)

    s2, b2 = _bn_fold(planes)
    out = conv_bn(out, blk["conv2"], s2, b2, stride=s, pad=1, relu=True)

    # conv3 + BN + residual add + ReLU fused into one matmul epilogue.
    s3, b3 = _bn_fold(planes * 4)
    out = conv_bn(out, blk["conv3"], s3, b3, residual,
                  stride=1, pad=0, relu=True)
    return out


def resnet101_ibn_a_forward(params, x_nchw):
    x = jnp.transpose(x_nchw, (0, 2, 3, 1))       # NCHW -> NHWC
    s0, b0 = _bn_fold(64)
    x = conv_bn(x, params["conv1"], s0, b0, stride=2, pad=3, relu=True)
    x = maxpool_3x3_s2(x)
    for blk in params["blocks"]:
        x = bottleneck_forward(x, blk)
    f_t = global_avgpool(x)                  # backbone features (fc = Identity), f32
    f_i = bottleneck_bn1d(f_t)               # BatchNorm1d bottleneck (eval stats)
    out = classifier(f_i, params["cls_w"])   # Linear(2048 -> 576, bias=False)
    return f_t, f_i, out


# ----------------------------- main -----------------------------

if __name__ == "__main__":
    key = jax.random.PRNGKey(0)
    params = init_params(key)
    x = jax.random.normal(key, (2, 3, 64, 64), jnp.float32)  # small NCHW input
    f_t, f_i, out = resnet101_ibn_a_forward(params, x)
    jax.block_until_ready((f_t, f_i, out))
    assert f_t.shape == (2, EMBED_DIM)
    assert f_i.shape == (2, EMBED_DIM)
    assert out.shape == (2, NUM_CLASSES)
    assert bool(jnp.all(jnp.isfinite(out)))
    print("KERNEL_OK")
</pallas_src>

<mosaic_0001>
module attributes {stable_mosaic.version = 11 : i64} {
  func.func @_matmul_kernel(%arg0: i32, %arg1: i32, %arg2: i32, %arg3: memref<256x147xbf16, #tpu.memory_space<vmem>>, %arg4: memref<147x64xbf16, #tpu.memory_space<vmem>>, %arg5: memref<1x64xf32, #tpu.memory_space<vmem>>, %arg6: memref<1x64xf32, #tpu.memory_space<vmem>>, %arg7: memref<256x64xbf16, #tpu.memory_space<vmem>>, %arg8: memref<256x64xf32, #tpu.memory_space<vmem>>) attributes {dimension_semantics = [#tpu.dimension_semantics<parallel>, #tpu.dimension_semantics<parallel>, #tpu.dimension_semantics<arbitrary>], iteration_bounds = array<i64: 8, 1, 1>, scalar_prefetch = 0 : i64, scratch_operands = 1 : i64, tpu.core_type = #tpu.core_type<tc>, window_params = [{transform_indices = @transform_0, window_bounds = array<i64: 256, 147>}, {transform_indices = @transform_1, window_bounds = array<i64: 147, 64>}, {transform_indices = @transform_2, window_bounds = array<i64: 1, 64>}, {transform_indices = @transform_3, window_bounds = array<i64: 1, 64>}, {transform_indices = @transform_4, window_bounds = array<i64: 256, 64>}]} {
    %c0_i32 = arith.constant 0 : i32
    %0 = arith.cmpi eq, %arg2, %c0_i32 : i32
    %1 = arith.extui %0 : i1 to i32
    %c0_i32_0 = arith.constant 0 : i32
    %2 = arith.cmpi ne, %1, %c0_i32_0 : i32
    scf.if %2 {
      %cst_10 = arith.constant 0.000000e+00 : f32
      %12 = vector.broadcast %cst_10 : f32 to vector<256x64xf32>
      %c0_11 = arith.constant 0 : index
      %c0_12 = arith.constant 0 : index
      %13 = vector.load %arg8[%c0_11, %c0_12] : memref<256x64xf32, #tpu.memory_space<vmem>>, vector<256x64xf32>
      tpu.vector_store %arg8[%c0_11, %c0_12], %12 {strides = array<i32>} : memref<256x64xf32, #tpu.memory_space<vmem>>, vector<256x64xf32>,
    } else {
    }
    %c0 = arith.constant 0 : index
    %c0_1 = arith.constant 0 : index
    %3 = vector.load %arg8[%c0, %c0_1] : memref<256x64xf32, #tpu.memory_space<vmem>>, vector<256x64xf32>
    %c0_2 = arith.constant 0 : index
    %c0_3 = arith.constant 0 : index
    %4 = vector.load %arg3[%c0_2, %c0_3] : memref<256x147xbf16, #tpu.memory_space<vmem>>, vector<256x147xbf16>
    %c0_4 = arith.constant 0 : index
    %c0_5 = arith.constant 0 : index
    %5 = vector.load %arg4[%c0_4, %c0_5] : memref<147x64xbf16, #tpu.memory_space<vmem>>, vector<147x64xbf16>
    %cst = arith.constant dense<0.000000e+00> : vector<256x64xf32>
    %6 = tpu.matmul %4, %5, %cst {dimension_numbers = #tpu.dot_dimension_numbers<[1], [0], [0], [1], [0, 0, 1, 1], [], []>} : vector<256x147xbf16>, vector<147x64xbf16>, vector<256x64xf32> -> vector<256x64xf32>
    %7 = arith.addf %3, %6 : vector<256x64xf32>
    %c0_6 = arith.constant 0 : index
    %c0_7 = arith.constant 0 : index
    %8 = vector.load %arg8[%c0_6, %c0_7] : memref<256x64xf32, #tpu.memory_space<vmem>>, vector<256x64xf32>
    tpu.vector_store %arg8[%c0_6, %c0_7], %7 {strides = array<i32>} : memref<256x64xf32, #tpu.memory_space<vmem>>, vector<256x64xf32>,
    %c0_i32_8 = arith.constant 0 : i32
    %9 = arith.cmpi eq, %arg2, %c0_i32_8 : i32
    %10 = arith.extui %9 : i1 to i32
    %c0_i32_9 = arith.constant 0 : i32
    %11 = arith.cmpi ne, %10, %c0_i32_9 : i32
    scf.if %11 {
      %c0_10 = arith.constant 0 : index
      %c0_11 = arith.constant 0 : index
      %12 = vector.load %arg8[%c0_10, %c0_11] : memref<256x64xf32, #tpu.memory_space<vmem>>, vector<256x64xf32>
      %c0_12 = arith.constant 0 : index
      %c0_13 = arith.constant 0 : index
      %13 = vector.load %arg5[%c0_12, %c0_13] : memref<1x64xf32, #tpu.memory_space<vmem>>, vector<1x64xf32>
      %14 = vector.broadcast %13 : vector<1x64xf32> to vector<256x64xf32>
      %15 = arith.mulf %12, %14 : vector<256x64xf32>
      %c0_14 = arith.constant 0 : index
      %c0_15 = arith.constant 0 : index
      %16 = vector.load %arg6[%c0_14, %c0_15] : memref<1x64xf32, #tpu.memory_space<vmem>>, vector<1x64xf32>
      %17 = vector.broadcast %16 : vector<1x64xf32> to vector<256x64xf32>
      %18 = arith.addf %15, %17 : vector<256x64xf32>
      %cst_16 = arith.constant 0.000000e+00 : f32
      %19 = vector.broadcast %cst_16 : f32 to vector<256x64xf32>
      %20 = arith.maximumf %18, %19 : vector<256x64xf32>
      %21 = arith.truncf %20 : vector<256x64xf32> to vector<256x64xbf16>
      %c0_17 = arith.constant 0 : index
      %c0_18 = arith.constant 0 : index
      %22 = vector.load %arg7[%c0_17, %c0_18] : memref<256x64xbf16, #tpu.memory_space<vmem>>, vector<256x64xbf16>
      tpu.vector_store %arg7[%c0_17, %c0_18], %21 {strides = array<i32>} : memref<256x64xbf16, #tpu.memory_space<vmem>>, vector<256x64xbf16>,
    } else {
    }
    return
  }
  func.func @transform_0(%arg0: i32, %arg1: i32, %arg2: i32) -> (i32, i32) {
    %c0_i32 = arith.constant 0 : i32
    return %arg0, %arg2 : i32, i32
  }
  func.func @transform_1(%arg0: i32, %arg1: i32, %arg2: i32) -> (i32, i32) {
    %c0_i32 = arith.constant 0 : i32
    return %arg2, %arg1 : i32, i32
  }
  func.func @transform_2(%arg0: i32, %arg1: i32, %arg2: i32) -> (i32, i32) {
    %c0_i32 = arith.constant 0 : i32
    %c0_i32_0 = arith.constant 0 : i32
    return %c0_i32, %arg1 : i32, i32
  }
  func.func @transform_3(%arg0: i32, %arg1: i32, %arg2: i32) -> (i32, i32) {
    %c0_i32 = arith.constant 0 : i32
    %c0_i32_0 = arith.constant 0 : i32
    return %c0_i32, %arg1 : i32, i32
  }
  func.func @transform_4(%arg0: i32, %arg1: i32, %arg2: i32) -> (i32, i32) {
    %c0_i32 = arith.constant 0 : i32
    return %arg0, %arg1 : i32, i32
  }
}

</mosaic_0001>

<llo_original>
// kernel: conv_bn.1
$region0: #{conv_bn.1}
  #allocation0 [shape = 'u32[]', space=smem, size = 0x4, offset = 0x4, fixed_abs, tag = 'smem constant byte address 0x4 - core index']
  #allocation1 [shape = 'u32[144,128]{1,0:T(1,128)}', space=vmem, size = 0x12000, scoped, tag = 'internal scratch']
  #allocation2 [shape = 'f32[256,64]{1,0:T(8,128)}', space=vmem, size = 0x20000, scoped, tag = 'scratch operand']
  %s0 = inlined_call_operand.vmem [shape: bf16[2048,147], index: 0, kind: input, shape index: {}]
  %s1 = inlined_call_operand.vmem [shape: bf16[147,64], index: 1, kind: input, shape index: {}]
  %s2 = inlined_call_operand.vmem [shape: f32[1,64], index: 2, kind: input, shape index: {}]
  %s3 = inlined_call_operand.vmem [shape: f32[1,64], index: 3, kind: input, shape index: {}]
  %s4 = inlined_call_operand.hbm [shape: bf16[2048,64], index: 4, kind: output, shape index: {}]
  %s5 = sld [smem:[#allocation0]]
  $region57: #{conv_bn.1} parent=0
    _
  %s7 = ssub.s32 1, %s5
  %s8 = scalar_select 0, %s7, %s5
  $region1: #{conv_bn.1} parent=0
    #allocation3 [shape = 'u8[131072]{0}', space=vmem, size = 0x20000, scoped, tag = 'output window, operand 0']
    #allocation4 [shape = 's32[2]{0}', space=sflag, size = 0x8, scoped, tag = 'scoped memory for conv_bn.1']
    %9 = vsyncpa [#allocation4], 0
    %s10 = scalar_lea.sflag [#allocation4], 1
    %11 = vsyncpa %s10, 0
    loop: start=0, step=1, limit=10
    $region2: #{conv_bn.1} parent=1 // loop_pre_header
      _
    $region3: #{conv_bn.1} parent=1 // loop_header
      %s13 = sphi 0, %s17
      %p14 = scmp.ge.s32.totalorder %s13, 10
      %s20 = sphi 0, %s39
      %s21 = sphi 0, %s35
      %s22 = sphi 0, %s31
      %s23 = sphi 0, %s20
      %s24 = sphi 0, %s21
      %s25 = sphi 0, %s22
      %s26 = sphi 0, %s23
      %s27 = sphi 0, %s24
      %s28 = sphi 0, %s25
      %s44 = sphi 0, %s46
      %s47 = sphi 0, %s44
      %s48 = sphi 0, %s47
      %s64 = sphi 0, %s48
      %s72 = sphi 0, %s74
      %s75 = sphi 0, %s72
      %s76 = sphi 0, %s75
      %s92 = sphi 0, %s76
      %s98 = sphi 0, %s100
      %s101 = sphi 0, %s98
      %s102 = sphi 0, %s101
      %s118 = sphi 0, %s102
      %s124 = sphi 0, %s126
      %s127 = sphi 0, %s124
      %s128 = sphi 0, %s127
      %s144 = sphi 0, %s128
      %s152 = sphi 0, %s154
      %s155 = sphi 0, %s152
      %s156 = sphi 0, %s155
      %s172 = sphi 0, %s156
    $region4: #{conv_bn.1} parent=1 // loop_header_branch
      %16 = sbr.rel (%p14) target = $region8
    $region5: #{conv_bn.1} parent=1 // loop_body
      %s18 = ssub.s32 %s13, 1
      %s19 = ssub.s32 %s13, 2
      %s29 = sadd.s32 1, %s22
      %p30 = scmp.ge.s32.totalorder %s29, 1
      %s31 = scalar_select %p30, 0, %s29
      %s32 = sadd.s32 1, %s21
      %s33 = scalar_select %p30, %s32, %s21
      %p34 = scmp.ge.s32.totalorder %s33, 1
      %s35 = scalar_select %p34, 0, %s33
      %s36 = sadd.s32 1, %s20
      %s37 = scalar_select %p34, %s36, %s20
      %p38 = scmp.ge.s32.totalorder %s37, 8
      %s39 = scalar_select %p38, 0, %s37
      %s40 = ssub.s32 %s20, %s39
      %s41 = ssub.s32 %s22, %s31
      %s42 = sor.u32 %s40, %s41
      %p43 = scmp.eq.s32.totalorder %s42, 0
      %s45 = sadd.s32 %s44, 1
      %s46 = scalar_select %p43, %s44, %s45
      %p49 = pneg %p43
      %p50 = scmp.eq.s32.totalorder %s13, 7
      %p51 = por %p49, %p50
      %p52 = scmp.ne.s32.totalorder %s44, %s47
      %p53 = scmp.eq.s32.totalorder %s13, 0
      %p54 = por %p52, %p53
      %p55 = scmp.ne.s32.totalorder %s44, %s47
      %p56 = scmp.eq.s32.totalorder %s18, 7
      %p57 = por %p55, %p56
      %p58 = scmp.ne.s32.totalorder %s47, %s48
      %p59 = scmp.eq.s32.totalorder %s18, 0
      %p60 = por %p58, %p59
      %p61 = scmp.ne.s32.totalorder %s47, %s48
      %p62 = scmp.eq.s32.totalorder %s19, 7
      %p63 = por %p61, %p62
      %p65 = scmp.ne.s32.totalorder %s48, %s64
      %p66 = scmp.eq.s32.totalorder %s19, 0
      %p67 = por %p65, %p66
      %s68 = ssub.s32 %s22, %s31
      %s69 = ssub.s32 %s21, %s35
      %s70 = sor.u32 %s68, %s69
      %p71 = scmp.eq.s32.totalorder %s70, 0
      %s73 = sadd.s32 %s72, 1
      %s74 = scalar_select %p71, %s72, %s73
      %p77 = pneg %p71
      %p78 = scmp.eq.s32.totalorder %s13, 7
      %p79 = por %p77, %p78
      %p80 = scmp.ne.s32.totalorder %s72, %s75
      %p81 = scmp.eq.s32.totalorder %s13, 0
      %p82 = por %p80, %p81
      %p83 = scmp.ne.s32.totalorder %s72, %s75
      %p84 = scmp.eq.s32.totalorder %s18, 7
      %p85 = por %p83, %p84
      %p86 = scmp.ne.s32.totalorder %s75, %s76
      %p87 = scmp.eq.s32.totalorder %s18, 0
      %p88 = por %p86, %p87
      %p89 = scmp.ne.s32.totalorder %s75, %s76
      %p90 = scmp.eq.s32.totalorder %s19, 7
      %p91 = por %p89, %p90
      %p93 = scmp.ne.s32.totalorder %s76, %s92
      %p94 = scmp.eq.s32.totalorder %s19, 0
      %p95 = por %p93, %p94
      %s96 = ssub.s32 %s21, %s35
      %p97 = scmp.eq.s32.totalorder %s96, 0
      %s99 = sadd.s32 %s98, 1
      %s100 = scalar_select %p97, %s98, %s99
      %p103 = pneg %p97
      %p104 = scmp.eq.s32.totalorder %s13, 7
      %p105 = por %p103, %p104
      %p106 = scmp.ne.s32.totalorder %s98, %s101
      %p107 = scmp.eq.s32.totalorder %s13, 0
      %p108 = por %p106, %p107
      %p109 = scmp.ne.s32.totalorder %s98, %s101
      %p110 = scmp.eq.s32.totalorder %s18, 7
      %p111 = por %p109, %p110
      %p112 = scmp.ne.s32.totalorder %s101, %s102
      %p113 = scmp.eq.s32.totalorder %s18, 0
      %p114 = por %p112, %p113
      %p115 = scmp.ne.s32.totalorder %s101, %s102
      %p116 = scmp.eq.s32.totalorder %s19, 7
      %p117 = por %p115, %p116
      %p119 = scmp.ne.s32.totalorder %s102, %s118
      %p120 = scmp.eq.s32.totalorder %s19, 0
      %p121 = por %p119, %p120
      %s122 = ssub.s32 %s21, %s35
      %p123 = scmp.eq.s32.totalorder %s122, 0
      %s125 = sadd.s32 %s124, 1
      %s126 = scalar_select %p123, %s124, %s125
      %p129 = pneg %p123
      %p130 = scmp.eq.s32.totalorder %s13, 7
      %p131 = por %p129, %p130
      %p132 = scmp.ne.s32.totalorder %s124, %s127
      %p133 = scmp.eq.s32.totalorder %s13, 0
      %p134 = por %p132, %p133
      %p135 = scmp.ne.s32.totalorder %s124, %s127
      %p136 = scmp.eq.s32.totalorder %s18, 7
      %p137 = por %p135, %p136
      %p138 = scmp.ne.s32.totalorder %s127, %s128
      %p139 = scmp.eq.s32.totalorder %s18, 0
      %p140 = por %p138, %p139
      %p141 = scmp.ne.s32.totalorder %s127, %s128
      %p142 = scmp.eq.s32.totalorder %s19, 7
      %p143 = por %p141, %p142
      %p145 = scmp.ne.s32.totalorder %s128, %s144
      %p146 = scmp.eq.s32.totalorder %s19, 0
      %p147 = por %p145, %p146
      %s148 = ssub.s32 %s20, %s39
      %s149 = ssub.s32 %s21, %s35
      %s150 = sor.u32 %s148, %s149
      %p151 = scmp.eq.s32.totalorder %s150, 0
      %s153 = sadd.s32 %s152, 1
      %s154 = scalar_select %p151, %s152, %s153
      %p157 = pneg %p151
      %p158 = scmp.eq.s32.totalorder %s13, 7
      %p159 = por %p157, %p158
      %p160 = scmp.ne.s32.totalorder %s152, %s155
      %p161 = scmp.eq.s32.totalorder %s13, 0
      %p162 = por %p160, %p161
      %p163 = scmp.ne.s32.totalorder %s152, %s155
      %p164 = scmp.eq.s32.totalorder %s18, 7
      %p165 = por %p163, %p164
      %p166 = scmp.ne.s32.totalorder %s155, %s156
      %p167 = scmp.eq.s32.totalorder %s18, 0
      %p168 = por %p166, %p167
      %p169 = scmp.ne.s32.totalorder %s155, %s156
      %p170 = scmp.eq.s32.totalorder %s19, 7
      %p171 = por %p169, %p170
      %p173 = scmp.ne.s32.totalorder %s156, %s172
      %p174 = scmp.eq.s32.totalorder %s19, 0
      %p175 = por %p173, %p174
      %p176 = scmp.le.s32.totalorder 1, %s13
      %p177 = scmp.lt.s32.totalorder %s13, 9
      %p178 = pnand %p176, %p177
      %p179 = pneg %p178
      // Predicated region
      $region9: #{conv_bn.1} parent=5 // pred_check
        _
      $region10: #{conv_bn.1} parent=5 // pred_check_branch
        %181 = sbr.rel (%p178) target = $region12
      $region11: #{conv_bn.1} parent=5 // pred_region
        %s182 = ssub.s32 %s13, 1
        // Predicated region
        $region13: #{conv_bn.1} parent=11 // pred_check
          %p183 = pneg %p88
        $region14: #{conv_bn.1} parent=11 // pred_check_branch
          %185 = sbr.rel (%p183) target = $region16
        $region15: #{conv_bn.1} parent=11 // pred_region
          %s186 = smul.u32 19, %s25
          %p187 = scmp.lt.s32.totalorder %s186, 18
          %s188 = scalar_select %p187, %s186, 18
          %p189 = scmp.lt.s32.totalorder %s24, 0
          %s190 = scalar_select %p189, %s24, 0
          %s191 = sadd.s32 %s190, %s188
          %s192 = smul.addr %s191, 4
          %s193 = scalar_lea.vmem %s1, %s192
          %s194 = smul.u32 19, %s25
        $region16: #{conv_bn.1} parent=11 // pred_fallthru
          _
        // Predicated region
        $region17: #{conv_bn.1} parent=11 // pred_check
          %p195 = pneg %p114
        $region18: #{conv_bn.1} parent=11 // pred_check_branch
          %197 = sbr.rel (%p195) target = $region20
        $region19: #{conv_bn.1} parent=11 // pred_region
          %p198 = scmp.lt.s32.totalorder %s24, 0
          %s199 = scalar_select %p198, %s24, 0
          %s200 = scalar_lea.vmem %s2, %s199
        $region20: #{conv_bn.1} parent=11 // pred_fallthru
          _
        // Predicated region
        $region21: #{conv_bn.1} parent=11 // pred_check
          %p201 = pneg %p140
        $region22: #{conv_bn.1} parent=11 // pred_check_branch
          %203 = sbr.rel (%p201) target = $region24
        $region23: #{conv_bn.1} parent=11 // pred_region
          %p204 = scmp.lt.s32.totalorder %s24, 0
          %s205 = scalar_select %p204, %s24, 0
          %s206 = scalar_lea.vmem %s3, %s205
        $region24: #{conv_bn.1} parent=11 // pred_fallthru
          _
      $region12: #{conv_bn.1} parent=5 // pred_fallthru
        _
      %p207 = scmp.lt.s32.totalorder %s13, 8
      // Predicated region
      $region25: #{conv_bn.1} parent=5 // pred_check
        %p208 = pneg %p207
      $region26: #{conv_bn.1} parent=5 // pred_check_branch
        %210 = sbr.rel (%p208) target = $region28
      $region27: #{conv_bn.1} parent=5 // pred_region
        // Predicated region
        $region29: #{conv_bn.1} parent=27 // pred_check
          %p211 = pneg %p54
        $region30: #{conv_bn.1} parent=27 // pred_check_branch
          %213 = sbr.rel (%p211) target = $region32
        $region31: #{conv_bn.1} parent=27 // pred_region
          %s214 = smul.u32 32, %s20
          %s215 = smul.u32 2, %s22
          %p216 = scmp.lt.s32.totalorder %s214, 255
          %s217 = scalar_select %p216, %s214, 255
          %p218 = scmp.lt.s32.totalorder %s215, 1
          %s219 = scalar_select %p218, %s215, 1
          %s220 = smul.addr %s217, 2
          %s221 = sadd.s32 %s219, %s220
          %s222 = smul.addr %s221, 4
          %s223 = scalar_lea.vmem %s0, %s222
          %s224 = smul.u32 32, %s20
          %s225 = smul.u32 2, %s22
        $region32: #{conv_bn.1} parent=27 // pred_fallthru
          _
      $region28: #{conv_bn.1} parent=5 // pred_fallthru
        _
      %p226 = scmp.le.s32.totalorder 1, %s13
      %p227 = scmp.lt.s32.totalorder %s13, 9
      %p228 = pnand %p226, %p227
      %p229 = pneg %p228
      // Predicated region
      $region33: #{conv_bn.1} parent=5 // pred_check
        _
      $region34: #{conv_bn.1} parent=5 // pred_check_branch
        %231 = sbr.rel (%p228) target = $region36
      $region35: #{conv_bn.1} parent=5 // pred_region
        %s232 = ssub.s32 %s13, 1
        %s233 = smul.u32 32, %s23
        %s234 = smul.u32 2, %s25
        %p235 = scmp.lt.s32.totalorder %s233, 255
        %s236 = scalar_select %p235, %s233, 255
        %p237 = scmp.lt.s32.totalorder %s234, 1
        %s238 = scalar_select %p237, %s234, 1
        %s239 = smul.addr %s236, 2
        %s240 = sadd.s32 %s238, %s239
        %s241 = smul.addr %s240, 4
        %s242 = scalar_lea.vmem %s0, %s241
        %p243 = pneg %p60
        %p244 = pneg %p57
        %s245 = smul.u32 19, %s25
        %p246 = scmp.lt.s32.totalorder %s245, 18
        %s247 = scalar_select %p246, %s245, 18
        %p248 = scmp.lt.s32.totalorder %s24, 0
        %s249 = scalar_select %p248, %s24, 0
        %s250 = sadd.s32 %s249, %s247
        %s251 = smul.addr %s250, 4
        %s252 = scalar_lea.vmem %s1, %s251
        %p253 = pneg %p88
        %p254 = pneg %p85
        %p255 = scmp.lt.s32.totalorder %s24, 0
        %s256 = scalar_select %p255, %s24, 0
        %s257 = scalar_lea.vmem %s2, %s256
        %p258 = pneg %p114
        %p259 = pneg %p111
        %p260 = scmp.lt.s32.totalorder %s24, 0
        %s261 = scalar_select %p260, %s24, 0
        %s262 = scalar_lea.vmem %s3, %s261
        %p263 = pneg %p140
        %p264 = pneg %p137
        %p265 = pneg %p168
        %p266 = pneg %p165
        %s267 = sand.u32 %s155, 1
        %s268 = scalar_lea.sflag [#allocation4], %s267
        %s269 = sand.u32 %s155, 1
        %s270 = smul.addr %s269, 128
        %s271 = scalar_lea.vmem [#allocation3], %s270
        %s272 = smul.u32 32, %s23
        %s273 = smul.u32 2, %s25
        %p274 = scmp.lt.s32.totalorder %s272, 255
        %s275 = scalar_select %p274, %s272, 255
        %p276 = scmp.lt.s32.totalorder %s273, 1
        %s277 = scalar_select %p276, %s273, 1
        %s278 = smul.addr %s275, 2
        %s279 = sadd.s32 %s277, %s278
        %s280 = smul.addr %s279, 4
        %s281 = scalar_lea.vmem %s0, %s280
        %s282 = smul.u32 32, %s23
        %s283 = smul.u32 2, %s25
        %s284 = smul.u32 19, %s25
        %p285 = scmp.lt.s32.totalorder %s284, 18
        %s286 = scalar_select %p285, %s284, 18
        %p287 = scmp.lt.s32.totalorder %s24, 0
        %s288 = scalar_select %p287, %s24, 0
        %s289 = sadd.s32 %s288, %s286
        %s290 = smul.addr %s289, 4
        %s291 = scalar_lea.vmem %s1, %s290
        %s292 = smul.u32 19, %s25
        %p293 = scmp.lt.s32.totalorder %s24, 0
        %s294 = scalar_select %p293, %s24, 0
        %s295 = scalar_lea.vmem %s2, %s294
        %p296 = scmp.lt.s32.totalorder %s24, 0
        %s297 = scalar_select %p296, %s24, 0
        %s298 = scalar_lea.vmem %s3, %s297
        %s299 = smul.u32 32, %s23
        %p301 = scmp.eq.s32.totalorder %s25, 0
        // Predicated region
        $region37: #{conv_bn.1} parent=35 // pred_check
          %p302 = pneg %p301
        $region38: #{conv_bn.1} parent=35 // pred_check_branch
          %304 = sbr.rel (%p302) target = $region40
        $region39: #{conv_bn.1} parent=35 // pred_region
          %vm305 = vcmask 523264
          %306 = vst.msk [vmem:[#allocation2] sm:$0xff] %vm305, 0.0
          %307 = vst.msk [vmem:[#allocation2 + $0x8] sm:$0xff] %vm305, 0.0
          %308 = vst.msk [vmem:[#allocation2 + $0x10] sm:$0xff] %vm305, 0.0
          %309 = vst.msk [vmem:[#allocation2 + $0x18] sm:$0xff] %vm305, 0.0
          %310 = vst.msk [vmem:[#allocation2 + $0x20] sm:$0xff] %vm305, 0.0
          %311 = vst.msk [vmem:[#allocation2 + $0x28] sm:$0xff] %vm305, 0.0
          %312 = vst.msk [vmem:[#allocation2 + $0x30] sm:$0xff] %vm305, 0.0
          %313 = vst.msk [vmem:[#allocation2 + $0x38] sm:$0xff] %vm305, 0.0
          %314 = vst.msk [vmem:[#allocation2 + $0x40] sm:$0xff] %vm305, 0.0
          %315 = vst.msk [vmem:[#allocation2 + $0x48] sm:$0xff] %vm305, 0.0
          %316 = vst.msk [vmem:[#allocation2 + $0x50] sm:$0xff] %vm305, 0.0
          %317 = vst.msk [vmem:[#allocation2 + $0x58] sm:$0xff] %vm305, 0.0
          %318 = vst.msk [vmem:[#allocation2 + $0x60] sm:$0xff] %vm305, 0.0
          %319 = vst.msk [vmem:[#allocation2 + $0x68] sm:$0xff] %vm305, 0.0
          %320 = vst.msk [vmem:[#allocation2 + $0x70] sm:$0xff] %vm305, 0.0
          %321 = vst.msk [vmem:[#allocation2 + $0x78] sm:$0xff] %vm305, 0.0
          %322 = vst.msk [vmem:[#allocation2 + $0x80] sm:$0xff] %vm305, 0.0
          %323 = vst.msk [vmem:[#allocation2 + $0x88] sm:$0xff] %vm305, 0.0
          %324 = vst.msk [vmem:[#allocation2 + $0x90] sm:$0xff] %vm305, 0.0
          %325 = vst.msk [vmem:[#allocation2 + $0x98] sm:$0xff] %vm305, 0.0
          %326 = vst.msk [vmem:[#allocation2 + $0xa0] sm:$0xff] %vm305, 0.0
          %327 = vst.msk [vmem:[#allocation2 + $0xa8] sm:$0xff] %vm305, 0.0
          %328 = vst.msk [vmem:[#allocation2 + $0xb0] sm:$0xff] %vm305, 0.0
          %329 = vst.msk [vmem:[#allocation2 + $0xb8] sm:$0xff] %vm305, 0.0
          %330 = vst.msk [vmem:[#allocation2 + $0xc0] sm:$0xff] %vm305, 0.0
          %331 = vst.msk [vmem:[#allocation2 + $0xc8] sm:$0xff] %vm305, 0.0
          %332 = vst.msk [vmem:[#allocation2 + $0xd0] sm:$0xff] %vm305, 0.0
          %333 = vst.msk [vmem:[#allocation2 + $0xd8] sm:$0xff] %vm305, 0.0
          %334 = vst.msk [vmem:[#allocation2 + $0xe0] sm:$0xff] %vm305, 0.0
          %335 = vst.msk [vmem:[#allocation2 + $0xe8] sm:$0xff] %vm305, 0.0
          %336 = vst.msk [vmem:[#allocation2 + $0xf0] sm:$0xff] %vm305, 0.0
          %337 = vst.msk [vmem:[#allocation2 + $0xf8] sm:$0xff] %vm305, 0.0
        $region40: #{conv_bn.1} parent=35 // pred_fallthru
          _
        %v338 = vld [vmem:[#allocation2] sm:$0xff]
        %v339 = vld [vmem:[#allocation2 + $0x8] sm:$0xff]
        %v340 = vld [vmem:[#allocation2 + $0x10] sm:$0xff]
        %v341 = vld [vmem:[#allocation2 + $0x18] sm:$0xff]
        %v342 = vld [vmem:[#allocation2 + $0x20] sm:$0xff]
        %v343 = vld [vmem:[#allocation2 + $0x28] sm:$0xff]
        %v344 = vld [vmem:[#allocation2 + $0x30] sm:$0xff]
        %v345 = vld [vmem:[#allocation2 + $0x38] sm:$0xff]
        %v346 = vld [vmem:[#allocation2 + $0x40] sm:$0xff]
        %v347 = vld [vmem:[#allocation2 + $0x48] sm:$0xff]
        %v348 = vld [vmem:[#allocation2 + $0x50] sm:$0xff]
        %v349 = vld [vmem:[#allocation2 + $0x58] sm:$0xff]
        %v350 = vld [vmem:[#allocation2 + $0x60] sm:$0xff]
        %v351 = vld [vmem:[#allocation2 + $0x68] sm:$0xff]
        %v352 = vld [vmem:[#allocation2 + $0x70] sm:$0xff]
        %v353 = vld [vmem:[#allocation2 + $0x78] sm:$0xff]
        %v354 = vld [vmem:[#allocation2 + $0x80] sm:$0xff]
        %v355 = vld [vmem:[#allocation2 + $0x88] sm:$0xff]
        %v356 = vld [vmem:[#allocation2 + $0x90] sm:$0xff]
        %v357 = vld [vmem:[#allocation2 + $0x98] sm:$0xff]
        %v358 = vld [vmem:[#allocation2 + $0xa0] sm:$0xff]
        %v359 = vld [vmem:[#allocation2 + $0xa8] sm:$0xff]
        %v360 = vld [vmem:[#allocation2 + $0xb0] sm:$0xff]
        %v361 = vld [vmem:[#allocation2 + $0xb8] sm:$0xff]
        %v362 = vld [vmem:[#allocation2 + $0xc0] sm:$0xff]
        %v363 = vld [vmem:[#allocation2 + $0xc8] sm:$0xff]
        %v364 = vld [vmem:[#allocation2 + $0xd0] sm:$0xff]
        %v365 = vld [vmem:[#allocation2 + $0xd8] sm:$0xff]
        %v366 = vld [vmem:[#allocation2 + $0xe0] sm:$0xff]
        %v367 = vld [vmem:[#allocation2 + $0xe8] sm:$0xff]
        %v368 = vld [vmem:[#allocation2 + $0xf0] sm:$0xff]
        %v369 = vld [vmem:[#allocation2 + $0xf8] sm:$0xff]
        %v370 = vld [vmem:[%s281] sm:$0xff]
        %v371 = vld [vmem:[%s281 + $0x8] sm:$0xff]
        %v372 = vld [vmem:[%s281 + $0x10] sm:$0xff]
        %v373 = vld [vmem:[%s281 + $0x18] sm:$0xff]
        %v374 = vld [vmem:[%s281 + $0x20] sm:$0xff]
        %v375 = vld [vmem:[%s281 + $0x28] sm:$0xff]
        %v376 = vld [vmem:[%s281 + $0x30] sm:$0xff]
        %v377 = vld [vmem:[%s281 + $0x38] sm:$0xff]
        %v378 = vld [vmem:[%s281 + $0x40] sm:$0xff]
        %v379 = vld [vmem:[%s281 + $0x48] sm:$0xff]
        %v380 = vld [vmem:[%s281 + $0x50] sm:$0xff]
        %v381 = vld [vmem:[%s281 + $0x58] sm:$0xff]
        %v382 = vld [vmem:[%s281 + $0x60] sm:$0xff]
        %v383 = vld [vmem:[%s281 + $0x68] sm:$0xff]
        %v384 = vld [vmem:[%s281 + $0x70] sm:$0xff]
        %v385 = vld [vmem:[%s281 + $0x78] sm:$0xff]
        %v386 = vld [vmem:[%s281 + $0x80] sm:$0xff]
        %v387 = vld [vmem:[%s281 + $0x88] sm:$0xff]
        %v388 = vld [vmem:[%s281 + $0x90] sm:$0xff]
        %v389 = vld [vmem:[%s281 + $0x98] sm:$0xff]
        %v390 = vld [vmem:[%s281 + $0xa0] sm:$0xff]
        %v391 = vld [vmem:[%s281 + $0xa8] sm:$0xff]
        %v392 = vld [vmem:[%s281 + $0xb0] sm:$0xff]
        %v393 = vld [vmem:[%s281 + $0xb8] sm:$0xff]
        %v394 = vld [vmem:[%s281 + $0xc0] sm:$0xff]
        %v395 = vld [vmem:[%s281 + $0xc8] sm:$0xff]
        %v396 = vld [vmem:[%s281 + $0xd0] sm:$0xff]
        %v397 = vld [vmem:[%s281 + $0xd8] sm:$0xff]
        %v398 = vld [vmem:[%s281 + $0xe0] sm:$0xff]
        %v399 = vld [vmem:[%s281 + $0xe8] sm:$0xff]
        %v400 = vld [vmem:[%s281 + $0xf0] sm:$0xff]
        %v401 = vld [vmem:[%s281 + $0xf8] sm:$0xff]
        %v402 = vld [vmem:[%s291] sm:$0xf]
        %v403 = vld [vmem:[%s291 + $0x4] sm:$0xf]
        %v404 = vld [vmem:[%s291 + $0x8] sm:$0xf]
        %v405 = vld [vmem:[%s291 + $0xc] sm:$0xf]
        %v406 = vld [vmem:[%s291 + $0x10] sm:$0xf]
        %v407 = vld [vmem:[%s291 + $0x14] sm:$0xf]
        %v408 = vld [vmem:[%s291 + $0x18] sm:$0xf]
        %v409 = vld [vmem:[%s291 + $0x1c] sm:$0xf]
        %v410 = vld [vmem:[%s291 + $0x20] sm:$0xf]
        %v411 = vld [vmem:[%s291 + $0x24] sm:$0xf]
        %v412 = vld [vmem:[%s291 + $0x28] sm:$0xf]
        %v413 = vld [vmem:[%s291 + $0x2c] sm:$0xf]
        %v414 = vld [vmem:[%s291 + $0x30] sm:$0xf]
        %v415 = vld [vmem:[%s291 + $0x34] sm:$0xf]
        %v416 = vld [vmem:[%s291 + $0x38] sm:$0xf]
        %v417 = vld [vmem:[%s291 + $0x3c] sm:$0xf]
        %v418 = vld [vmem:[%s291 + $0x40] sm:$0xf]
        %v419 = vld [vmem:[%s291 + $0x44] sm:$0xf]
        %v420 = vld [vmem:[%s291 + $0x48] sm:$0x3]
        %v453 = vunpack.c.l.b16 %v370
        %v454 = vunpack.c.h.b16 %v370
        %v455 = vunpack.c.l.b16 %v371
        %v456 = vunpack.c.h.b16 %v371
        %v457 = vunpack.c.l.b16 %v372
        %v458 = vunpack.c.h.b16 %v372
        %v459 = vunpack.c.l.b16 %v373
        %v460 = vunpack.c.h.b16 %v373
        %v461 = vunpack.c.l.b16 %v374
        %v462 = vunpack.c.h.b16 %v374
        %v463 = vunpack.c.l.b16 %v375
        %v464 = vunpack.c.h.b16 %v375
        %v465 = vunpack.c.l.b16 %v376
        %v466 = vunpack.c.h.b16 %v376
        %v467 = vunpack.c.l.b16 %v377
        %v468 = vunpack.c.h.b16 %v377
        %v469 = vunpack.c.l.b16 %v378
        %v470 = vunpack.c.h.b16 %v378
        %v471 = vunpack.c.l.b16 %v379
        %v472 = vunpack.c.h.b16 %v379
        %v473 = vunpack.c.l.b16 %v380
        %v474 = vunpack.c.h.b16 %v380
        %v475 = vunpack.c.l.b16 %v381
        %v476 = vunpack.c.h.b16 %v381
        %v477 = vunpack.c.l.b16 %v382
        %v478 = vunpack.c.h.b16 %v382
        %v479 = vunpack.c.l.b16 %v383
        %v480 = vunpack.c.h.b16 %v383
        %v481 = vunpack.c.l.b16 %v384
        %v482 = vunpack.c.h.b16 %v384
        %v483 = vunpack.c.l.b16 %v385
        %v484 = vunpack.c.h.b16 %v385
        %v485 = vunpack.c.l.b16 %v386
        %v486 = vunpack.c.h.b16 %v386
        %v487 = vunpack.c.l.b16 %v387
        %v488 = vunpack.c.h.b16 %v387
        %v489 = vunpack.c.l.b16 %v388
        %v490 = vunpack.c.h.b16 %v388
        %v491 = vunpack.c.l.b16 %v389
        %v492 = vunpack.c.h.b16 %v389
        %v493 = vunpack.c.l.b16 %v390
        %v494 = vunpack.c.h.b16 %v390
        %v495 = vunpack.c.l.b16 %v391
        %v496 = vunpack.c.h.b16 %v391
        %v497 = vunpack.c.l.b16 %v392
        %v498 = vunpack.c.h.b16 %v392
        %v499 = vunpack.c.l.b16 %v393
        %v500 = vunpack.c.h.b16 %v393
        %v501 = vunpack.c.l.b16 %v394
        %v502 = vunpack.c.h.b16 %v394
        %v503 = vunpack.c.l.b16 %v395
        %v504 = vunpack.c.h.b16 %v395
        %v505 = vunpack.c.l.b16 %v396
        %v506 = vunpack.c.h.b16 %v396
        %v507 = vunpack.c.l.b16 %v397
        %v508 = vunpack.c.h.b16 %v397
        %v509 = vunpack.c.l.b16 %v398
        %v510 = vunpack.c.h.b16 %v398
        %v511 = vunpack.c.l.b16 %v399
        %v512 = vunpack.c.h.b16 %v399
        %v513 = vunpack.c.l.b16 %v400
        %v514 = vunpack.c.h.b16 %v400
        %v515 = vunpack.c.l.b16 %v401
        %v516 = vunpack.c.h.b16 %v401
        %v517 = vpack.c.b16 %v455, %v453
        %v518 = vpack.c.b16 %v456, %v454
        %v519 = vpack.c.b16 %v459, %v457
        %v520 = vpack.c.b16 %v460, %v458
        %v521 = vpack.c.b16 %v463, %v461
        %v522 = vpack.c.b16 %v464, %v462
        %v523 = vpack.c.b16 %v467, %v465
        %v524 = vpack.c.b16 %v468, %v466
        %v525 = vpack.c.b16 %v471, %v469
        %v526 = vpack.c.b16 %v472, %v470
        %v527 = vpack.c.b16 %v475, %v473
        %v528 = vpack.c.b16 %v476, %v474
        %v529 = vpack.c.b16 %v479, %v477
        %v530 = vpack.c.b16 %v480, %v478
        %v531 = vpack.c.b16 %v483, %v481
        %v532 = vpack.c.b16 %v484, %v482
        %v533 = vpack.c.b16 %v487, %v485
        %v534 = vpack.c.b16 %v488, %v486
        %v535 = vpack.c.b16 %v491, %v489
        %v536 = vpack.c.b16 %v492, %v490
        %v537 = vpack.c.b16 %v495, %v493
        %v538 = vpack.c.b16 %v496, %v494
        %v539 = vpack.c.b16 %v499, %v497
        %v540 = vpack.c.b16 %v500, %v498
        %v541 = vpack.c.b16 %v503, %v501
        %v542 = vpack.c.b16 %v504, %v502
        %v543 = vpack.c.b16 %v507, %v505
        %v544 = vpack.c.b16 %v508, %v506
        %v545 = vpack.c.b16 %v511, %v509
        %v546 = vpack.c.b16 %v512, %v510
        %v547 = vpack.c.b16 %v515, %v513
        %v548 = vpack.c.b16 %v516, %v514
        %v584 = vunpack.c.l.b16 %v402
        %v585 = vunpack.c.l.b16 %v403
        %v586 = vunpack.c.l.b16 %v404
        %v587 = vunpack.c.l.b16 %v405
        %v588 = vunpack.c.l.b16 %v406
        %v589 = vunpack.c.l.b16 %v407
        %v590 = vunpack.c.l.b16 %v408
        %v591 = vunpack.c.l.b16 %v409
        %v592 = vunpack.c.l.b16 %v410
        %v593 = vunpack.c.l.b16 %v411
        %v594 = vunpack.c.l.b16 %v412
        %v595 = vunpack.c.l.b16 %v413
        %v596 = vunpack.c.l.b16 %v414
        %v597 = vunpack.c.l.b16 %v415
        %v598 = vunpack.c.l.b16 %v416
        %v599 = vunpack.c.l.b16 %v417
        %v600 = vunpack.c.l.b16 %v418
        %v601 = vunpack.c.l.b16 %v419
        %v602 = vunpack.c.l.b16 %v420
        %v603 = vpack.c.b16 %v585, %v584
        %v604 = vpack.c.b16 %v587, %v586
        %v605 = vpack.c.b16 %v589, %v588
        %v606 = vpack.c.b16 %v591, %v590
        %v607 = vpack.c.b16 %v593, %v592
        %v608 = vpack.c.b16 %v595, %v594
        %v609 = vpack.c.b16 %v597, %v596
        %v610 = vpack.c.b16 %v599, %v598
        %v611 = vpack.c.b16 %v601, %v600
        %v612 = vpack.c.b16 %v602, %v602
        %vm622 = vcmask 154624
        %v624 = vsel %vm622, %v518, 0
        %v627 = vsel %vm622, %v520, 0
        %v630 = vsel %vm622, %v522, 0
        %v633 = vsel %vm622, %v524, 0
        %v636 = vsel %vm622, %v526, 0
        %v639 = vsel %vm622, %v528, 0
        %v642 = vsel %vm622, %v530, 0
        %v645 = vsel %vm622, %v532, 0
        %v648 = vsel %vm622, %v534, 0
        %v651 = vsel %vm622, %v536, 0
        %v654 = vsel %vm622, %v538, 0
        %v657 = vsel %vm622, %v540, 0
        %v660 = vsel %vm622, %v542, 0
        %v663 = vsel %vm622, %v544, 0
        %v666 = vsel %vm622, %v546, 0
        %v669 = vsel %vm622, %v548, 0
        %vm671 = vcmask 1040384
        %vm672 = vcmask 1041408
        %v673 = vsel %vm671, 4294967295, 65535
        %v674 = vsel %vm672, %v673, 0
        %v676 = vand.u32 %v612, %v674
        %678 = vmatprep.subr.bf16.mxu0 0
        %679 = vmatpush1.bf16.msra.mxu0 %v610
        %680 = vmatprep.subr.bf16.mxu0 0
        %681 = vmatpush1.bf16.msra.mxu0 %v609
        %682 = vmatprep.subr.bf16.mxu0 0
        %683 = vmatpush1.bf16.msra.mxu0 %v608
        %684 = vmatprep.subr.bf16.mxu0 0
        %685 = vmatpush1.bf16.msra.mxu0 %v607
        %686 = vmatprep.subr.bf16.mxu0 0
        %687 = vmatpush1.bf16.msra.mxu0 %v606
        %688 = vmatprep.subr.bf16.mxu0 0
        %689 = vmatpush1.bf16.msra.mxu0 %v605
        %690 = vmatprep.subr.bf16.mxu0 0
        %691 = vmatpush1.bf16.msra.mxu0 %v604
        %692 = vmatprep.subr.bf16.mxu0 0
        %693 = vmatpush1.bf16.msra.mxu0 %v603
        %694 = vmatprep.subr.bf16.mxu0 0
        %695 = vmatpush2.bf16.msra.mxu0 0
        %696 = vmatprep.subr.bf16.mxu0 0
        %697 = vmatpush2.bf16.msra.mxu0 0
        %698 = vmatprep.subr.bf16.mxu0 0
        %699 = vmatpush2.bf16.msra.mxu0 0
        %700 = vmatprep.subr.bf16.mxu0 0
        %701 = vmatpush2.bf16.msra.mxu0 0
        %702 = vmatprep.subr.bf16.mxu0 0
        %703 = vmatpush2.bf16.msra.mxu0 0
        %704 = vmatprep.subr.bf16.mxu0 0
        %705 = vmatpush2.bf16.msra.mxu0 0
        %706 = vmatprep.subr.bf16.mxu0 0
        %707 = vmatpush2.bf16.msra.mxu0 %v676
        %708 = vmatprep.subr.bf16.mxu0 0
        %709 = vmatpush2.bf16.msra.mxu0 %v611
        %710 = vmatprep.mubr.bf16.mxu0 %v624
        %711 = vmatmul.mubr.bf16.gmra.mxu0 %v517
        %v712 = vpop.f32.mrf.mxu0
        %v713 = vadd.f32 0.0, %v712
        %v714 = vpop.f32.mrf.mxu0
        %v715 = vpop.f32.mrf.mxu0
        %v716 = vadd.f32 0.0, %v715
        %v717 = vpop.f32.mrf.mxu0
        %718 = vmatprep.mubr.bf16.mxu0 %v627
        %719 = vmatmul.mubr.bf16.gmra.mxu0 %v519
        %v720 = vpop.f32.mrf.mxu0
        %v721 = vadd.f32 0.0, %v720
        %v722 = vpop.f32.mrf.mxu0
        %v723 = vpop.f32.mrf.mxu0
        %v724 = vadd.f32 0.0, %v723
        %v725 = vpop.f32.mrf.mxu0
        %726 = vmatprep.mubr.bf16.mxu0 %v630
        %727 = vmatmul.mubr.bf16.gmra.mxu0 %v521
        %v728 = vpop.f32.mrf.mxu0
        %v729 = vadd.f32 0.0, %v728
        %v730 = vpop.f32.mrf.mxu0
        %v731 = vpop.f32.mrf.mxu0
        %v732 = vadd.f32 0.0, %v731
        %v733 = vpop.f32.mrf.mxu0
        %734 = vmatprep.mubr.bf16.mxu0 %v633
        %735 = vmatmul.mubr.bf16.gmra.mxu0 %v523
        %v736 = vpop.f32.mrf.mxu0
        %v737 = vadd.f32 0.0, %v736
        %v738 = vpop.f32.mrf.mxu0
        %v739 = vpop.f32.mrf.mxu0
        %v740 = vadd.f32 0.0, %v739
        %v741 = vpop.f32.mrf.mxu0
        %742 = vmatprep.mubr.bf16.mxu0 %v636
        %743 = vmatmul.mubr.bf16.gmra.mxu0 %v525
        %v744 = vpop.f32.mrf.mxu0
        %v745 = vadd.f32 0.0, %v744
        %v746 = vpop.f32.mrf.mxu0
        %v747 = vpop.f32.mrf.mxu0
        %v748 = vadd.f32 0.0, %v747
        %v749 = vpop.f32.mrf.mxu0
        %750 = vmatprep.mubr.bf16.mxu0 %v639
        %751 = vmatmul.mubr.bf16.gmra.mxu0 %v527
        %v752 = vpop.f32.mrf.mxu0
        %v753 = vadd.f32 0.0, %v752
        %v754 = vpop.f32.mrf.mxu0
        %v755 = vpop.f32.mrf.mxu0
        %v756 = vadd.f32 0.0, %v755
        %v757 = vpop.f32.mrf.mxu0
        %758 = vmatprep.mubr.bf16.mxu0 %v642
        %759 = vmatmul.mubr.bf16.gmra.mxu0 %v529
        %v760 = vpop.f32.mrf.mxu0
        %v761 = vadd.f32 0.0, %v760
        %v762 = vpop.f32.mrf.mxu0
        %v763 = vpop.f32.mrf.mxu0
        %v764 = vadd.f32 0.0, %v763
        %v765 = vpop.f32.mrf.mxu0
        %766 = vmatprep.mubr.bf16.mxu0 %v645
        %767 = vmatmul.mubr.bf16.gmra.mxu0 %v531
        %v768 = vpop.f32.mrf.mxu0
        %v769 = vadd.f32 0.0, %v768
        %v770 = vpop.f32.mrf.mxu0
        %v771 = vpop.f32.mrf.mxu0
        %v772 = vadd.f32 0.0, %v771
        %v773 = vpop.f32.mrf.mxu0
        %774 = vmatprep.mubr.bf16.mxu0 %v648
        %775 = vmatmul.mubr.bf16.gmra.mxu0 %v533
        %v776 = vpop.f32.mrf.mxu0
        %v777 = vadd.f32 0.0, %v776
        %v778 = vpop.f32.mrf.mxu0
        %v779 = vpop.f32.mrf.mxu0
        %v780 = vadd.f32 0.0, %v779
        %v781 = vpop.f32.mrf.mxu0
        %782 = vmatprep.mubr.bf16.mxu0 %v651
        %783 = vmatmul.mubr.bf16.gmra.mxu0 %v535
        %v784 = vpop.f32.mrf.mxu0
        %v785 = vadd.f32 0.0, %v784
        %v786 = vpop.f32.mrf.mxu0
        %v787 = vpop.f32.mrf.mxu0
        %v788 = vadd.f32 0.0, %v787
        %v789 = vpop.f32.mrf.mxu0
        %790 = vmatprep.mubr.bf16.mxu0 %v654
        %791 = vmatmul.mubr.bf16.gmra.mxu0 %v537
        %v792 = vpop.f32.mrf.mxu0
        %v793 = vadd.f32 0.0, %v792
        %v794 = vpop.f32.mrf.mxu0
        %v795 = vpop.f32.mrf.mxu0
        %v796 = vadd.f32 0.0, %v795
        %v797 = vpop.f32.mrf.mxu0
        %798 = vmatprep.mubr.bf16.mxu0 %v657
        %799 = vmatmul.mubr.bf16.gmra.mxu0 %v539
        %v800 = vpop.f32.mrf.mxu0
        %v801 = vadd.f32 0.0, %v800
        %v802 = vpop.f32.mrf.mxu0
        %v803 = vpop.f32.mrf.mxu0
        %v804 = vadd.f32 0.0, %v803
        %v805 = vpop.f32.mrf.mxu0
        %806 = vmatprep.mubr.bf16.mxu0 %v660
        %807 = vmatmul.mubr.bf16.gmra.mxu0 %v541
        %v808 = vpop.f32.mrf.mxu0
        %v809 = vadd.f32 0.0, %v808
        %v810 = vpop.f32.mrf.mxu0
        %v811 = vpop.f32.mrf.mxu0
        %v812 = vadd.f32 0.0, %v811
        %v813 = vpop.f32.mrf.mxu0
        %814 = vmatprep.mubr.bf16.mxu0 %v663
        %815 = vmatmul.mubr.bf16.gmra.mxu0 %v543
        %v816 = vpop.f32.mrf.mxu0
        %v817 = vadd.f32 0.0, %v816
        %v818 = vpop.f32.mrf.mxu0
        %v819 = vpop.f32.mrf.mxu0
        %v820 = vadd.f32 0.0, %v819
        %v821 = vpop.f32.mrf.mxu0
        %822 = vmatprep.mubr.bf16.mxu0 %v666
        %823 = vmatmul.mubr.bf16.gmra.mxu0 %v545
        %v824 = vpop.f32.mrf.mxu0
        %v825 = vadd.f32 0.0, %v824
        %v826 = vpop.f32.mrf.mxu0
        %v827 = vpop.f32.mrf.mxu0
        %v828 = vadd.f32 0.0, %v827
        %v829 = vpop.f32.mrf.mxu0
        %830 = vmatprep.mubr.bf16.mxu0 %v669
        %831 = vmatmul.mubr.bf16.gmra.mxu0 %v547
        %v832 = vpop.f32.mrf.mxu0
        %v833 = vadd.f32 0.0, %v832
        %v834 = vpop.f32.mrf.mxu0
        %v835 = vpop.f32.mrf.mxu0
        %v836 = vadd.f32 0.0, %v835
        %v837 = vpop.f32.mrf.mxu0
        %838 = vdwg.mxu0
        %v839 = vadd.f32 %v338, %v713
        %v840 = vadd.f32 %v339, %v716
        %v841 = vadd.f32 %v340, %v721
        %v842 = vadd.f32 %v341, %v724
        %v843 = vadd.f32 %v342, %v729
        %v844 = vadd.f32 %v343, %v732
        %v845 = vadd.f32 %v344, %v737
        %v846 = vadd.f32 %v345, %v740
        %v847 = vadd.f32 %v346, %v745
        %v848 = vadd.f32 %v347, %v748
        %v849 = vadd.f32 %v348, %v753
        %v850 = vadd.f32 %v349, %v756
        %v851 = vadd.f32 %v350, %v761
        %v852 = vadd.f32 %v351, %v764
        %v853 = vadd.f32 %v352, %v769
        %v854 = vadd.f32 %v353, %v772
        %v855 = vadd.f32 %v354, %v777
        %v856 = vadd.f32 %v355, %v780
        %v857 = vadd.f32 %v356, %v785
        %v858 = vadd.f32 %v357, %v788
        %v859 = vadd.f32 %v358, %v793
        %v860 = vadd.f32 %v359, %v796
        %v861 = vadd.f32 %v360, %v801
        %v862 = vadd.f32 %v361, %v804
        %v863 = vadd.f32 %v362, %v809
        %v864 = vadd.f32 %v363, %v812
        %v865 = vadd.f32 %v364, %v817
        %v866 = vadd.f32 %v365, %v820
        %v867 = vadd.f32 %v366, %v825
        %v868 = vadd.f32 %v367, %v828
        %v869 = vadd.f32 %v368, %v833
        %v870 = vadd.f32 %v369, %v836
        %vm871 = vcmask 523264
        %872 = vst.msk [vmem:[#allocation2] sm:$0xff] %vm871, %v839
        %873 = vst.msk [vmem:[#allocation2 + $0x8] sm:$0xff] %vm871, %v840
        %874 = vst.msk [vmem:[#allocation2 + $0x10] sm:$0xff] %vm871, %v841
        %875 = vst.msk [vmem:[#allocation2 + $0x18] sm:$0xff] %vm871, %v842
        %876 = vst.msk [vmem:[#allocation2 + $0x20] sm:$0xff] %vm871, %v843
        %877 = vst.msk [vmem:[#allocation2 + $0x28] sm:$0xff] %vm871, %v844
        %878 = vst.msk [vmem:[#allocation2 + $0x30] sm:$0xff] %vm871, %v845
        %879 = vst.msk [vmem:[#allocation2 + $0x38] sm:$0xff] %vm871, %v846
        %880 = vst.msk [vmem:[#allocation2 + $0x40] sm:$0xff] %vm871, %v847
        %881 = vst.msk [vmem:[#allocation2 + $0x48] sm:$0xff] %vm871, %v848
        %882 = vst.msk [vmem:[#allocation2 + $0x50] sm:$0xff] %vm871, %v849
        %883 = vst.msk [vmem:[#allocation2 + $0x58] sm:$0xff] %vm871, %v850
        %884 = vst.msk [vmem:[#allocation2 + $0x60] sm:$0xff] %vm871, %v851
        %885 = vst.msk [vmem:[#allocation2 + $0x68] sm:$0xff] %vm871, %v852
        %886 = vst.msk [vmem:[#allocation2 + $0x70] sm:$0xff] %vm871, %v853
        %887 = vst.msk [vmem:[#allocation2 + $0x78] sm:$0xff] %vm871, %v854
        %888 = vst.msk [vmem:[#allocation2 + $0x80] sm:$0xff] %vm871, %v855
        %889 = vst.msk [vmem:[#allocation2 + $0x88] sm:$0xff] %vm871, %v856
        %890 = vst.msk [vmem:[#allocation2 + $0x90] sm:$0xff] %vm871, %v857
        %891 = vst.msk [vmem:[#allocation2 + $0x98] sm:$0xff] %vm871, %v858
        %892 = vst.msk [vmem:[#allocation2 + $0xa0] sm:$0xff] %vm871, %v859
        %893 = vst.msk [vmem:[#allocation2 + $0xa8] sm:$0xff] %vm871, %v860
        %894 = vst.msk [vmem:[#allocation2 + $0xb0] sm:$0xff] %vm871, %v861
        %895 = vst.msk [vmem:[#allocation2 + $0xb8] sm:$0xff] %vm871, %v862
        %896 = vst.msk [vmem:[#allocation2 + $0xc0] sm:$0xff] %vm871, %v863
        %897 = vst.msk [vmem:[#allocation2 + $0xc8] sm:$0xff] %vm871, %v864
        %898 = vst.msk [vmem:[#allocation2 + $0xd0] sm:$0xff] %vm871, %v865
        %899 = vst.msk [vmem:[#allocation2 + $0xd8] sm:$0xff] %vm871, %v866
        %900 = vst.msk [vmem:[#allocation2 + $0xe0] sm:$0xff] %vm871, %v867
        %901 = vst.msk [vmem:[#allocation2 + $0xe8] sm:$0xff] %vm871, %v868
        %902 = vst.msk [vmem:[#allocation2 + $0xf0] sm:$0xff] %vm871, %v869
        %903 = vst.msk [vmem:[#allocation2 + $0xf8] sm:$0xff] %vm871, %v870
        // Predicated region
        $region41: #{conv_bn.1} parent=35 // pred_check
          %p904 = pneg %p301
        $region42: #{conv_bn.1} parent=35 // pred_check_branch
          %906 = sbr.rel (%p904) target = $region44
        $region43: #{conv_bn.1} parent=35 // pred_region
          %v907 = vld [vmem:[#allocation2] sm:$0xff]
          %v908 = vld [vmem:[#allocation2 + $0x8] sm:$0xff]
          %v909 = vld [vmem:[#allocation2 + $0x10] sm:$0xff]
          %v910 = vld [vmem:[#allocation2 + $0x18] sm:$0xff]
          %v911 = vld [vmem:[#allocation2 + $0x20] sm:$0xff]
          %v912 = vld [vmem:[#allocation2 + $0x28] sm:$0xff]
          %v913 = vld [vmem:[#allocation2 + $0x30] sm:$0xff]
          %v914 = vld [vmem:[#allocation2 + $0x38] sm:$0xff]
          %v915 = vld [vmem:[#allocation2 + $0x40] sm:$0xff]
          %v916 = vld [vmem:[#allocation2 + $0x48] sm:$0xff]
          %v917 = vld [vmem:[#allocation2 + $0x50] sm:$0xff]
          %v918 = vld [vmem:[#allocation2 + $0x58] sm:$0xff]
          %v919 = vld [vmem:[#allocation2 + $0x60] sm:$0xff]
          %v920 = vld [vmem:[#allocation2 + $0x68] sm:$0xff]
          %v921 = vld [vmem:[#allocation2 + $0x70] sm:$0xff]
          %v922 = vld [vmem:[#allocation2 + $0x78] sm:$0xff]
          %v923 = vld [vmem:[#allocation2 + $0x80] sm:$0xff]
          %v924 = vld [vmem:[#allocation2 + $0x88] sm:$0xff]
          %v925 = vld [vmem:[#allocation2 + $0x90] sm:$0xff]
          %v926 = vld [vmem:[#allocation2 + $0x98] sm:$0xff]
          %v927 = vld [vmem:[#allocation2 + $0xa0] sm:$0xff]
          %v928 = vld [vmem:[#allocation2 + $0xa8] sm:$0xff]
          %v929 = vld [vmem:[#allocation2 + $0xb0] sm:$0xff]
          %v930 = vld [vmem:[#allocation2 + $0xb8] sm:$0xff]
          %v931 = vld [vmem:[#allocation2 + $0xc0] sm:$0xff]
          %v932 = vld [vmem:[#allocation2 + $0xc8] sm:$0xff]
          %v933 = vld [vmem:[#allocation2 + $0xd0] sm:$0xff]
          %v934 = vld [vmem:[#allocation2 + $0xd8] sm:$0xff]
          %v935 = vld [vmem:[#allocation2 + $0xe0] sm:$0xff]
          %v936 = vld [vmem:[#allocation2 + $0xe8] sm:$0xff]
          %v937 = vld [vmem:[#allocation2 + $0xf0] sm:$0xff]
          %v938 = vld [vmem:[#allocation2 + $0xf8] sm:$0xff]
          %v939 = vld [vmem:[%s295] sm:$0x1]
          %v941 = vlaneseq
          %v942 = vshrl.u32 %v941, 7
          %v943 = vsub.s32 0, %v942
          %v944 = vrot.slane %v939, %v943
          %v946 = vmul.f32 %v907, %v944
          %v947 = vmul.f32 %v908, %v944
          %v948 = vmul.f32 %v909, %v944
          %v949 = vmul.f32 %v910, %v944
          %v950 = vmul.f32 %v911, %v944
          %v951 = vmul.f32 %v912, %v944
          %v952 = vmul.f32 %v913, %v944
          %v953 = vmul.f32 %v914, %v944
          %v954 = vmul.f32 %v915, %v944
          %v955 = vmul.f32 %v916, %v944
          %v956 = vmul.f32 %v917, %v944
          %v957 = vmul.f32 %v918, %v944
          %v958 = vmul.f32 %v919, %v944
          %v959 = vmul.f32 %v920, %v944
          %v960 = vmul.f32 %v921, %v944
          %v961 = vmul.f32 %v922, %v944
          %v962 = vmul.f32 %v923, %v944
          %v963 = vmul.f32 %v924, %v944
          %v964 = vmul.f32 %v925, %v944
          %v965 = vmul.f32 %v926, %v944
          %v966 = vmul.f32 %v927, %v944
          %v967 = vmul.f32 %v928, %v944
          %v968 = vmul.f32 %v929, %v944
          %v969 = vmul.f32 %v930, %v944
          %v970 = vmul.f32 %v931, %v944
          %v971 = vmul.f32 %v932, %v944
          %v972 = vmul.f32 %v933, %v944
          %v973 = vmul.f32 %v934, %v944
          %v974 = vmul.f32 %v935, %v944
          %v975 = vmul.f32 %v936, %v944
          %v976 = vmul.f32 %v937, %v944
          %v977 = vmul.f32 %v938, %v944
          %v978 = vld [vmem:[%s298] sm:$0x1]
          %v980 = vlaneseq
          %v981 = vshrl.u32 %v980, 7
          %v982 = vsub.s32 0, %v981
          %v983 = vrot.slane %v978, %v982
          %v985 = vadd.f32 %v946, %v983
          %v986 = vadd.f32 %v947, %v983
          %v987 = vadd.f32 %v948, %v983
          %v988 = vadd.f32 %v949, %v983
          %v989 = vadd.f32 %v950, %v983
          %v990 = vadd.f32 %v951, %v983
          %v991 = vadd.f32 %v952, %v983
          %v992 = vadd.f32 %v953, %v983
          %v993 = vadd.f32 %v954, %v983
          %v994 = vadd.f32 %v955, %v983
          %v995 = vadd.f32 %v956, %v983
          %v996 = vadd.f32 %v957, %v983
          %v997 = vadd.f32 %v958, %v983
          %v998 = vadd.f32 %v959, %v983
          %v999 = vadd.f32 %v960, %v983
          %v1000 = vadd.f32 %v961, %v983
          %v1001 = vadd.f32 %v962, %v983
          %v1002 = vadd.f32 %v963, %v983
          %v1003 = vadd.f32 %v964, %v983
          %v1004 = vadd.f32 %v965, %v983
          %v1005 = vadd.f32 %v966, %v983
          %v1006 = vadd.f32 %v967, %v983
          %v1007 = vadd.f32 %v968, %v983
          %v1008 = vadd.f32 %v969, %v983
          %v1009 = vadd.f32 %v970, %v983
          %v1010 = vadd.f32 %v971, %v983
          %v1011 = vadd.f32 %v972, %v983
          %v1012 = vadd.f32 %v973, %v983
          %v1013 = vadd.f32 %v974, %v983
          %v1014 = vadd.f32 %v975, %v983
          %v1015 = vadd.f32 %v976, %v983
          %v1016 = vadd.f32 %v977, %v983
          %v1017 = vmax.f32 %v985, 0.0
          %v1018 = vmax.f32 %v986, 0.0
          %v1019 = vmax.f32 %v987, 0.0
          %v1020 = vmax.f32 %v988, 0.0
          %v1021 = vmax.f32 %v989, 0.0
          %v1022 = vmax.f32 %v990, 0.0
          %v1023 = vmax.f32 %v991, 0.0
          %v1024 = vmax.f32 %v992, 0.0
          %v1025 = vmax.f32 %v993, 0.0
          %v1026 = vmax.f32 %v994, 0.0
          %v1027 = vmax.f32 %v995, 0.0
          %v1028 = vmax.f32 %v996, 0.0
          %v1029 = vmax.f32 %v997, 0.0
          %v1030 = vmax.f32 %v998, 0.0
          %v1031 = vmax.f32 %v999, 0.0
          %v1032 = vmax.f32 %v1000, 0.0
          %v1033 = vmax.f32 %v1001, 0.0
          %v1034 = vmax.f32 %v1002, 0.0
          %v1035 = vmax.f32 %v1003, 0.0
          %v1036 = vmax.f32 %v1004, 0.0
          %v1037 = vmax.f32 %v1005, 0.0
          %v1038 = vmax.f32 %v1006, 0.0
          %v1039 = vmax.f32 %v1007, 0.0
          %v1040 = vmax.f32 %v1008, 0.0
          %v1041 = vmax.f32 %v1009, 0.0
          %v1042 = vmax.f32 %v1010, 0.0
          %v1043 = vmax.f32 %v1011, 0.0
          %v1044 = vmax.f32 %v1012, 0.0
          %v1045 = vmax.f32 %v1013, 0.0
          %v1046 = vmax.f32 %v1014, 0.0
          %v1047 = vmax.f32 %v1015, 0.0
          %v1048 = vmax.f32 %v1016, 0.0
          %v1049 = vpack.c.bf16 %v1018, %v1017
          %v1050 = vpack.c.bf16 %v1020, %v1019
          %v1051 = vpack.c.bf16 %v1022, %v1021
          %v1052 = vpack.c.bf16 %v1024, %v1023
          %v1053 = vpack.c.bf16 %v1026, %v1025
          %v1054 = vpack.c.bf16 %v1028, %v1027
          %v1055 = vpack.c.bf16 %v1030, %v1029
          %v1056 = vpack.c.bf16 %v1032, %v1031
          %v1057 = vpack.c.bf16 %v1034, %v1033
          %v1058 = vpack.c.bf16 %v1036, %v1035
          %v1059 = vpack.c.bf16 %v1038, %v1037
          %v1060 = vpack.c.bf16 %v1040, %v1039
          %v1061 = vpack.c.bf16 %v1042, %v1041
          %v1062 = vpack.c.bf16 %v1044, %v1043
          %v1063 = vpack.c.bf16 %v1046, %v1045
          %v1064 = vpack.c.bf16 %v1048, %v1047
          %v1081 = vunpack.c.l.b16 %v1049
          %v1082 = vunpack.c.h.b16 %v1049
          %v1083 = vunpack.c.l.b16 %v1050
          %v1084 = vunpack.c.h.b16 %v1050
          %v1085 = vunpack.c.l.b16 %v1051
          %v1086 = vunpack.c.h.b16 %v1051
          %v1087 = vunpack.c.l.b16 %v1052
          %v1088 = vunpack.c.h.b16 %v1052
          %v1089 = vunpack.c.l.b16 %v1053
          %v1090 = vunpack.c.h.b16 %v1053
          %v1091 = vunpack.c.l.b16 %v1054
          %v1092 = vunpack.c.h.b16 %v1054
          %v1093 = vunpack.c.l.b16 %v1055
          %v1094 = vunpack.c.h.b16 %v1055
          %v1095 = vunpack.c.l.b16 %v1056
          %v1096 = vunpack.c.h.b16 %v1056
          %v1097 = vunpack.c.l.b16 %v1057
          %v1098 = vunpack.c.h.b16 %v1057
          %v1099 = vunpack.c.l.b16 %v1058
          %v1100 = vunpack.c.h.b16 %v1058
          %v1101 = vunpack.c.l.b16 %v1059
          %v1102 = vunpack.c.h.b16 %v1059
          %v1103 = vunpack.c.l.b16 %v1060
          %v1104 = vunpack.c.h.b16 %v1060
          %v1105 = vunpack.c.l.b16 %v1061
          %v1106 = vunpack.c.h.b16 %v1061
          %v1107 = vunpack.c.l.b16 %v1062
          %v1108 = vunpack.c.h.b16 %v1062
          %v1109 = vunpack.c.l.b16 %v1063
          %v1110 = vunpack.c.h.b16 %v1063
          %v1111 = vunpack.c.l.b16 %v1064
          %v1112 = vunpack.c.h.b16 %v1064
          %v1113 = vpack.c.b16 %v1081, %v1081
          %v1114 = vpack.c.b16 %v1082, %v1082
          %v1115 = vpack.c.b16 %v1083, %v1083
          %v1116 = vpack.c.b16 %v1084, %v1084
          %v1117 = vpack.c.b16 %v1085, %v1085
          %v1118 = vpack.c.b16 %v1086, %v1086
          %v1119 = vpack.c.b16 %v1087, %v1087
          %v1120 = vpack.c.b16 %v1088, %v1088
          %v1121 = vpack.c.b16 %v1089, %v1089
          %v1122 = vpack.c.b16 %v1090, %v1090
          %v1123 = vpack.c.b16 %v1091, %v1091
          %v1124 = vpack.c.b16 %v1092, %v1092
          %v1125 = vpack.c.b16 %v1093, %v1093
          %v1126 = vpack.c.b16 %v1094, %v1094
          %v1127 = vpack.c.b16 %v1095, %v1095
          %v1128 = vpack.c.b16 %v1096, %v1096
          %v1129 = vpack.c.b16 %v1097, %v1097
          %v1130 = vpack.c.b16 %v1098, %v1098
          %v1131 = vpack.c.b16 %v1099, %v1099
          %v1132 = vpack.c.b16 %v1100, %v1100
          %v1133 = vpack.c.b16 %v1101, %v1101
          %v1134 = vpack.c.b16 %v1102, %v1102
          %v1135 = vpack.c.b16 %v1103, %v1103
          %v1136 = vpack.c.b16 %v1104, %v1104
          %v1137 = vpack.c.b16 %v1105, %v1105
          %v1138 = vpack.c.b16 %v1106, %v1106
          %v1139 = vpack.c.b16 %v1107, %v1107
          %v1140 = vpack.c.b16 %v1108, %v1108
          %v1141 = vpack.c.b16 %v1109, %v1109
          %v1142 = vpack.c.b16 %v1110, %v1110
          %v1143 = vpack.c.b16 %v1111, %v1111
          %v1144 = vpack.c.b16 %v1112, %v1112
          %vm1177 = vcmask 519168
          %1178 = vst.msk [vmem:[%s271] sm:$0xf] %vm1177, %v1113
          %1179 = vst.msk [vmem:[%s271 + $0x4] sm:$0xf] %vm1177, %v1114
          %1180 = vst.msk [vmem:[%s271 + $0x8] sm:$0xf] %vm1177, %v1115
          %1181 = vst.msk [vmem:[%s271 + $0xc] sm:$0xf] %vm1177, %v1116
          %1182 = vst.msk [vmem:[%s271 + $0x10] sm:$0xf] %vm1177, %v1117
          %1183 = vst.msk [vmem:[%s271 + $0x14] sm:$0xf] %vm1177, %v1118
          %1184 = vst.msk [vmem:[%s271 + $0x18] sm:$0xf] %vm1177, %v1119
          %1185 = vst.msk [vmem:[%s271 + $0x1c] sm:$0xf] %vm1177, %v1120
          %1186 = vst.msk [vmem:[%s271 + $0x20] sm:$0xf] %vm1177, %v1121
          %1187 = vst.msk [vmem:[%s271 + $0x24] sm:$0xf] %vm1177, %v1122
          %1188 = vst.msk [vmem:[%s271 + $0x28] sm:$0xf] %vm1177, %v1123
          %1189 = vst.msk [vmem:[%s271 + $0x2c] sm:$0xf] %vm1177, %v1124
          %1190 = vst.msk [vmem:[%s271 + $0x30] sm:$0xf] %vm1177, %v1125
          %1191 = vst.msk [vmem:[%s271 + $0x34] sm:$0xf] %vm1177, %v1126
          %1192 = vst.msk [vmem:[%s271 + $0x38] sm:$0xf] %vm1177, %v1127
          %1193 = vst.msk [vmem:[%s271 + $0x3c] sm:$0xf] %vm1177, %v1128
          %1194 = vst.msk [vmem:[%s271 + $0x40] sm:$0xf] %vm1177, %v1129
          %1195 = vst.msk [vmem:[%s271 + $0x44] sm:$0xf] %vm1177, %v1130
          %1196 = vst.msk [vmem:[%s271 + $0x48] sm:$0xf] %vm1177, %v1131
          %1197 = vst.msk [vmem:[%s271 + $0x4c] sm:$0xf] %vm1177, %v1132
          %1198 = vst.msk [vmem:[%s271 + $0x50] sm:$0xf] %vm1177, %v1133
          %1199 = vst.msk [vmem:[%s271 + $0x54] sm:$0xf] %vm1177, %v1134
          %1200 = vst.msk [vmem:[%s271 + $0x58] sm:$0xf] %vm1177, %v1135
          %1201 = vst.msk [vmem:[%s271 + $0x5c] sm:$0xf] %vm1177, %v1136
          %1202 = vst.msk [vmem:[%s271 + $0x60] sm:$0xf] %vm1177, %v1137
          %1203 = vst.msk [vmem:[%s271 + $0x64] sm:$0xf] %vm1177, %v1138
          %1204 = vst.msk [vmem:[%s271 + $0x68] sm:$0xf] %vm1177, %v1139
          %1205 = vst.msk [vmem:[%s271 + $0x6c] sm:$0xf] %vm1177, %v1140
          %1206 = vst.msk [vmem:[%s271 + $0x70] sm:$0xf] %vm1177, %v1141
          %1207 = vst.msk [vmem:[%s271 + $0x74] sm:$0xf] %vm1177, %v1142
          %1208 = vst.msk [vmem:[%s271 + $0x78] sm:$0xf] %vm1177, %v1143
          %1209 = vst.msk [vmem:[%s271 + $0x7c] sm:$0xf] %vm1177, %v1144
        $region44: #{conv_bn.1} parent=35 // pred_fallthru
          _
        %s1210 = sand.u32 %s155, 1
        %s1211 = scalar_lea.sflag [#allocation4], %s1210
        %s1212 = sand.u32 %s155, 1
        %s1213 = smul.addr %s1212, 128
        %s1214 = scalar_lea.vmem [#allocation3], %s1213
        // Predicated region
        $region45: #{conv_bn.1} parent=35 // pred_check
          %p1215 = pneg %p165
        $region46: #{conv_bn.1} parent=35 // pred_check_branch
          %1217 = sbr.rel (%p1215) target = $region48
        $region47: #{conv_bn.1} parent=35 // pred_region
          %s1218 = smul.u32 32, %s23
          %s1220 = ssub.s32 2048, 2048
          %1221 = vsyncadd %s1211, %s1220
          %s1222 = sadd.s32 %s24, %s1218
          %s1223 = smul.addr %s1222, 64
          %s1224 = scalar_lea.hbm %s4, %s1223
          %s1225 = sshll.u32 %s1214, 4
          %s1226 = int_to_ptr.vmem [resolvable:$true] %s1225
          %1231 = dma.vmem_to_hbm [thread:$0]  %s1226, 2048, %s1224, %s1211, 64, 64, 4
        $region48: #{conv_bn.1} parent=35 // pred_fallthru
          _
      $region36: #{conv_bn.1} parent=5 // pred_fallthru
        _
      %p1232 = scmp.le.s32.totalorder 2, %s13
      // Predicated region
      $region49: #{conv_bn.1} parent=5 // pred_check
        %p1233 = pneg %p1232
      $region50: #{conv_bn.1} parent=5 // pred_check_branch
        %1235 = sbr.rel (%p1233) target = $region52
      $region51: #{conv_bn.1} parent=5 // pred_region
        %s1236 = ssub.s32 %s13, 2
        // Predicated region
        $region53: #{conv_bn.1} parent=51 // pred_check
          %p1237 = pneg %p171
        $region54: #{conv_bn.1} parent=51 // pred_check_branch
          %1239 = sbr.rel (%p1237) target = $region56
        $region55: #{conv_bn.1} parent=51 // pred_region
          %s1240 = sand.u32 %s156, 1
          %s1241 = scalar_lea.sflag [#allocation4], %s1240
          %s1242 = sand.u32 %s156, 1
          %s1243 = smul.addr %s1242, 128
          %s1244 = scalar_lea.vmem [#allocation3], %s1243
          %1245 = dma.done %s1241, 2048
        $region56: #{conv_bn.1} parent=51 // pred_fallthru
          _
      $region52: #{conv_bn.1} parent=5 // pred_fallthru
        _
    $region6: #{conv_bn.1} parent=1 // loop_footer
      %s17 = sadd.s32 1, %s13
    $region7: #{conv_bn.1} parent=1 // loop_footer_branch
      %12 = sbr.rel target = $region3
    $region8: #{conv_bn.1} parent=1 // loop_exit
      _
    %1246 = vsyncpa [#allocation4], 1
    %s1247 = scalar_lea.sflag [#allocation4], 1
    %1248 = vsyncpa %s1247, 1

</llo_original>
